<compile_context>
chip_gen: v7x
topology: tpu7x:2x2x1
jax: 0.10.0
libtpu: 0.0.40
codegen_flags: <defaults>
</compile_context>

<pallas_src>
import jax
import jax.numpy as jnp
from jax.experimental import pallas as pl
from jax.experimental.pallas import tpu as pltpu


def _combine_loss_kernel(packed_ref, out_ref):
    # packed_ref: f32[4] in SMEM = [loss, probe_loss, superParameter, 2**(-epoch)]
    loss = packed_ref[0]
    probe = packed_ref[1]
    param = packed_ref[2]
    factor = packed_ref[3]
    combined = loss + probe * param * factor
    # PyTorch's `if probe_loss.item() > 0.1` -> scalar select
    out_ref[0] = jnp.where(probe > jnp.float32(0.1), combined, loss)


class CombineLoss:
    """JAX/Pallas port of the PyTorch CombineLoss module."""

    def __init__(self, para: float):
        # mirrors torch.tensor(para)
        self.super_parameter = jnp.float32(para)

        self._call = pl.pallas_call(
            _combine_loss_kernel,
            out_shape=jax.ShapeDtypeStruct((1,), jnp.float32),
            in_specs=[pl.BlockSpec(memory_space=pltpu.MemorySpace.SMEM)],
            out_specs=pl.BlockSpec(memory_space=pltpu.MemorySpace.SMEM),
        )

    def __call__(self, loss, probe_loss, epoch):
        # 2**(-epoch): PyTorch computes this with Python `pow(2, -epoch)`,
        # i.e. outside the tensor graph.  Mirror that; also accept traced epochs.
        if isinstance(epoch, jax.Array):
            factor = jnp.exp2(-epoch.astype(jnp.float32))
        else:
            factor = jnp.float32(2.0 ** (-epoch))

        packed = jnp.stack(
            [
                jnp.float32(loss),
                jnp.float32(probe_loss),
                self.super_parameter,
                factor,
            ]
        )  # f32[4]
        out = self._call(packed)
        return out[0]  # scalar, like the PyTorch module returns


def _reference(loss, probe_loss, epoch, para):
    # pure-JAX reference of the PyTorch forward
    loss = jnp.float32(loss)
    probe_loss = jnp.float32(probe_loss)
    combined = loss + probe_loss * jnp.float32(para) * jnp.float32(2.0 ** (-epoch))
    return jnp.where(probe_loss > 0.1, combined, loss)


if __name__ == "__main__":
    key = jax.random.PRNGKey(0)
    k1, k2 = jax.random.split(key)

    para = 0.5
    epoch = 3
    module = CombineLoss(para)

    # case 1: probe_loss > 0.1  -> scaled combination
    loss_a = jax.random.uniform(k1, (), jnp.float32, 0.5, 1.5)
    probe_a = jax.random.uniform(k2, (), jnp.float32, 0.2, 1.0)
    out_a = jax.block_until_ready(module(loss_a, probe_a, epoch))
    ref_a = _reference(loss_a, probe_a, epoch, para)

    # case 2: probe_loss <= 0.1 -> pass-through of loss
    probe_b = jnp.float32(0.05)
    out_b = jax.block_until_ready(module(loss_a, probe_b, epoch))
    ref_b = _reference(loss_a, probe_b, epoch, para)

    assert jnp.allclose(out_a, ref_a, atol=1e-6), (out_a, ref_a)
    assert jnp.allclose(out_b, ref_b, atol=1e-6), (out_b, ref_b)

    print("KERNEL_OK")
</pallas_src>

<mosaic_0001>
module attributes {stable_mosaic.version = 11 : i64} {
  func.func @_combine_loss_kernel(%arg0: memref<4xf32, #tpu.memory_space<smem>>, %arg1: memref<1xf32, #tpu.memory_space<smem>>) attributes {dimension_semantics = [], scalar_prefetch = 0 : i64, scratch_operands = 0 : i64, tpu.core_type = #tpu.core_type<tc>} {
    %c0 = arith.constant 0 : index
    %0 = memref.load %arg0[%c0] : memref<4xf32, #tpu.memory_space<smem>>
    %c1 = arith.constant 1 : index
    %1 = memref.load %arg0[%c1] : memref<4xf32, #tpu.memory_space<smem>>
    %c2 = arith.constant 2 : index
    %2 = memref.load %arg0[%c2] : memref<4xf32, #tpu.memory_space<smem>>
    %c3 = arith.constant 3 : index
    %3 = memref.load %arg0[%c3] : memref<4xf32, #tpu.memory_space<smem>>
    %4 = arith.mulf %1, %2 : f32
    %5 = arith.mulf %4, %3 : f32
    %6 = arith.addf %0, %5 : f32
    %cst = arith.constant 1.000000e-01 : f32
    %7 = arith.cmpf ogt, %1, %cst : f32
    %8 = arith.select %7, %6, %0 : f32
    %c0_0 = arith.constant 0 : index
    %9 = memref.load %arg1[%c0_0] : memref<1xf32, #tpu.memory_space<smem>>
    memref.store %8, %arg1[%c0_0] : memref<1xf32, #tpu.memory_space<smem>>
    return
  }
}

</mosaic_0001>

<llo_original>
// kernel: tpu_custom_call.1
$region0: #{tpu_custom_call.1}
  #allocation0 [shape = 'u32[]', space=smem, size = 0x4, offset = 0x4, fixed_abs, tag = 'smem constant byte address 0x4 - core index']
  #allocation1 [shape = 'u32[144,128]{1,0:T(1,128)}', space=vmem, size = 0x12000, scoped, tag = 'internal scratch']
  %s0 = inlined_call_operand.hbm [shape: f32[4], index: 0, kind: input, shape index: {}]
  %s1 = inlined_call_operand.hbm [shape: f32[1], index: 1, kind: output, shape index: {}]
  %s2 = sld [smem:[#allocation0]]
  $region18: #{tpu_custom_call.1} parent=0
    _
  %s4 = ssub.s32 1, %s2
  %s5 = scalar_select 0, %s4, %s2
  $region1: #{tpu_custom_call.1} parent=0
    #allocation2 [shape = 'u8[512]{0}', space=smem, size = 0x200, scoped, tag = 'input window, operand 0, single buffered']
    #allocation3 [shape = 's32[1]{0}', space=sflag, size = 0x4, scoped, tag = 'scoped memory for tpu_custom_call.1']
    #allocation4 [shape = 's32[1]{0}', space=sflag, size = 0x4, scoped, tag = 'scoped memory for tpu_custom_call.1']
    #allocation5 [shape = 'u8[512]{0}', space=smem, size = 0x200, scoped, tag = 'output window, operand 0, single buffered']
    %6 = vsyncpa [#allocation3], 0
    %7 = vsyncpa [#allocation4], 0
    // Predicated region
    $region2: #{tpu_custom_call.1} parent=1 // pred_check
      _
    $region3: #{tpu_custom_call.1} parent=1 // pred_check_branch
      %9 = sbr.rel (0) target = $region5
    $region4: #{tpu_custom_call.1} parent=1 // pred_region
      %s11 = ssub.s32 16, 16
      %12 = vsyncadd [#allocation3], %s11
      %15 = dma.hbm_to_smem %s0, 16, [#allocation2], [#allocation3]
    $region5: #{tpu_custom_call.1} parent=1 // pred_fallthru
      _
    // Predicated region
    $region6: #{tpu_custom_call.1} parent=1 // pred_check
      _
    $region7: #{tpu_custom_call.1} parent=1 // pred_check_branch
      %17 = sbr.rel (0) target = $region9
    $region8: #{tpu_custom_call.1} parent=1 // pred_region
      %18 = dma.done [#allocation3], 16
    $region9: #{tpu_custom_call.1} parent=1 // pred_fallthru
      _
    %19 = sfence
    %s20 = sld [smem:[#allocation2]]
    %s21 = sld [smem:[#allocation2 + $0x1]]
    %s22 = sld [smem:[#allocation2 + $0x2]]
    %s23 = sld [smem:[#allocation2 + $0x3]]
    %s24 = smul.f32 %s21, %s22
    %s25 = smul.f32 %s24, %s23
    %s26 = sadd.f32 %s20, %s25
    %p27 = scmp.gt.f32.partialorder %s21, 0.1
    %s28 = scalar_select %p27, %s26, %s20
    %s29 = scalar_lea.smem [#allocation5], 0
    %30 = sst [smem:[%s29]] %s28
    // Predicated region
    $region10: #{tpu_custom_call.1} parent=1 // pred_check
      _
    $region11: #{tpu_custom_call.1} parent=1 // pred_check_branch
      %32 = sbr.rel (0) target = $region13
    $region12: #{tpu_custom_call.1} parent=1 // pred_region
      %s34 = ssub.s32 16, 16
      %35 = vsyncadd [#allocation4], %s34
      %38 = dma.smem_to_hbm [#allocation5], 16, %s1, [#allocation4]
    $region13: #{tpu_custom_call.1} parent=1 // pred_fallthru
      _
    // Predicated region
    $region14: #{tpu_custom_call.1} parent=1 // pred_check
      _
    $region15: #{tpu_custom_call.1} parent=1 // pred_check_branch
      %40 = sbr.rel (0) target = $region17
    $region16: #{tpu_custom_call.1} parent=1 // pred_region
      %41 = dma.done [#allocation4], 16
    $region17: #{tpu_custom_call.1} parent=1 // pred_fallthru
      _
    %42 = sfence
    %43 = vsyncpa [#allocation3], 1
    %44 = vsyncpa [#allocation4], 1

</llo_original>
